<compile_context>
chip_gen: v5e
topology: v5e:2x2
jax: 0.10.0
libtpu: 0.0.40
codegen_flags: <defaults>
</compile_context>

<pallas_src>
import numpy as np

import jax
import jax.numpy as jnp
from jax import lax
from jax.experimental import pallas as pl
from jax.experimental.pallas import tpu as pltpu

EPS = 1e-5
NEG_SLOPE = 0.01  # PyTorch LeakyReLU default


# ---------------------------------------------------------------------------
# Fused Pallas kernel: input BN + (circ-conv3x3 + BN + LeakyReLU) * 2
# ---------------------------------------------------------------------------
def inconv_fused_kernel(x_ref, sh_ref, w1_ref, w2_ref, p_ref, o_ref):
    # x_ref : (M, W*Cin)         lane-dense rows = (image, h) flattened
    # sh_ref: (2, M, M)          masked H-shift matrices [up, down] (f32)
    # w1_ref: (3*W*Cin,  W*Cmid) bf16 stacked block-circulant weights (dy-major)
    # w2_ref: (3*W*Cmid, W*Cout) bf16
    # p_ref : (8, PW)            packed f32 vectors: rows = [in_s, in_b,
    #                            s1, b1, s2, b2, 0, 0], each tiled over W
    # o_ref : (M, W*Cout)        lane-dense output slab
    kin = x_ref.shape[1]
    kmid = w1_ref.shape[1]
    kout = o_ref.shape[1]

    s_up = sh_ref[0]      # picks row h-1, zero at per-image row 0
    s_down = sh_ref[1]    # picks row h+1, zero at per-image row H-1

    # Input BatchNorm (eval-mode), applied BEFORE the implicit zero H padding
    # (i.e. before the shift matmuls) to match the PyTorch op order.
    x = x_ref[...] * p_ref[0:1, :kin] + p_ref[1:2, :kin]          # (M, W*Cin)

    def conv_block(z, w_ref, scale, shift):
        # Zero-padded H shift as tiny MXU matmuls (boundary rows pre-zeroed
        # in the host-built matrices -> correct even with N*H rows flattened).
        up = jnp.dot(s_up, z, preferred_element_type=jnp.float32)     # x[h-1]
        down = jnp.dot(s_down, z, preferred_element_type=jnp.float32)  # x[h+1]
        # Fold the three dy taps into ONE stacked-K GEMM, bf16 in / f32 acc.
        zcat = jnp.concatenate([up, z, down], axis=1).astype(jnp.bfloat16)
        acc = jnp.dot(zcat, w_ref[...], preferred_element_type=jnp.float32)
        y = acc * scale + shift                    # conv bias + eval BN (f32)
        return jnp.maximum(y, NEG_SLOPE * y)       # LeakyReLU

    y1 = conv_block(x, w1_ref, p_ref[2:3, :kmid], p_ref[3:4, :kmid])
    y2 = conv_block(y1, w2_ref, p_ref[4:5, :kout], p_ref[5:6, :kout])
    o_ref[...] = y2.astype(o_ref.dtype)            # lane-dense (M, 256) store


# ---------------------------------------------------------------------------
# Wrapper: single pallas_call over grid=(N // imgs_per_step,)
# ---------------------------------------------------------------------------
def inconv_forward(x_nhwc, kp):
    N, H, W, Cin = x_nhwc.shape
    rows = kp["shifts"].shape[1]          # imgs_per_step * H (static)
    imgs_per_step = rows // H
    assert N % imgs_per_step == 0
    grid_n = N // imgs_per_step
    Cmid = kp["w1s"].shape[1] // W
    Cout = kp["w2s"].shape[1] // W
    pw = kp["pvec"].shape[1]

    x_slab = x_nhwc.reshape(N * H, W * Cin)        # free, contiguous

    out_slab = pl.pallas_call(
        inconv_fused_kernel,
        out_shape=jax.ShapeDtypeStruct((N * H, W * Cout), jnp.float32),
        grid=(grid_n,),
        in_specs=[
            pl.BlockSpec((rows, W * Cin), lambda n: (n, 0)),
            pl.BlockSpec((2, rows, rows), lambda n: (0, 0, 0)),
            pl.BlockSpec((3 * W * Cin, W * Cmid), lambda n: (0, 0)),
            pl.BlockSpec((3 * W * Cmid, W * Cout), lambda n: (0, 0)),
            pl.BlockSpec((8, pw), lambda n: (0, 0)),
        ],
        out_specs=pl.BlockSpec((rows, W * Cout), lambda n: (n, 0)),
        compiler_params=pltpu.CompilerParams(
            dimension_semantics=("parallel",)),    # >=2 steps -> both v7x TCs
    )(x_slab, kp["shifts"], kp["w1s"], kp["w2s"], kp["pvec"])

    return out_slab.reshape(N, H, W, Cout)


# ---------------------------------------------------------------------------
# Host-side weight preparation (free, done once)
# ---------------------------------------------------------------------------
def make_banded_weights(w_hwio, W):
    """(3,3,Cin,Cout) HWIO kernel -> (3*W*Cin, W*Cout) stacked circulant mats.

    Band dy occupies rows [dy*W*Cin, (dy+1)*W*Cin); within a band,
    M[wi*Cin+ci, wo*Cout+co] = w[dy, dx, ci, co] with wi = (wo + dx - 1) % W,
    i.e. the circular W padding is baked into the weight structure.
    """
    kh, kw, Cin, Cout = w_hwio.shape
    w_np = np.asarray(w_hwio, dtype=np.float32)
    out = np.zeros((3, W * Cin, W * Cout), np.float32)
    for dy in range(3):
        for wo in range(W):
            for dx in range(3):
                wi = (wo + dx - 1) % W
                out[dy, wi * Cin:(wi + 1) * Cin,
                    wo * Cout:(wo + 1) * Cout] = w_np[dy, dx]
    return out.reshape(3 * W * Cin, W * Cout)


def choose_tiling(N, H, max_rows=256):
    """>=2 parallel grid steps when possible (v7x has 2 TCs); up to ~256 GEMM
    rows per step (one full MXU pass on v6e/v7x, two on v5e)."""
    imgs = max(1, min(N // 2 if N >= 2 else 1, max(1, max_rows // H)))
    while N % imgs:
        imgs -= 1
    return imgs


def make_params(key, in_ch, out_ch, H, W, N):
    ks = jax.random.split(key, 8)

    def bn_fold(k, ch):
        kg, kb, km, kv = jax.random.split(k, 4)
        gamma = 1.0 + 0.1 * jax.random.normal(kg, (ch,), jnp.float32)
        beta = 0.1 * jax.random.normal(kb, (ch,), jnp.float32)
        mean = 0.05 * jax.random.normal(km, (ch,), jnp.float32)
        var = jnp.abs(1.0 + 0.1 * jax.random.normal(kv, (ch,), jnp.float32))
        s = gamma / jnp.sqrt(var + EPS)
        return s, beta - mean * s

    # input BN (eval-mode, folded to per-channel scale/shift)
    in_scale, in_bias = bn_fold(ks[0], in_ch)

    # conv1: PyTorch weight (out, in, 3, 3) -> HWIO (3, 3, in, out)
    w1 = 0.1 * jax.random.normal(ks[1], (out_ch, in_ch, 3, 3), jnp.float32)
    cb1 = 0.1 * jax.random.normal(ks[2], (out_ch,), jnp.float32)
    s1_bn, b1_bn = bn_fold(ks[3], out_ch)
    s1, b1 = s1_bn, s1_bn * cb1 + b1_bn        # fold conv bias into BN shift

    # conv2
    w2 = 0.1 * jax.random.normal(ks[4], (out_ch, out_ch, 3, 3), jnp.float32)
    cb2 = 0.1 * jax.random.normal(ks[5], (out_ch,), jnp.float32)
    s2_bn, b2_bn = bn_fold(ks[6], out_ch)
    s2, b2 = s2_bn, s2_bn * cb2 + b2_bn

    w1_hwio = jnp.transpose(w1, (2, 3, 1, 0))
    w2_hwio = jnp.transpose(w2, (2, 3, 1, 0))

    ref_params = dict(in_scale=in_scale, in_bias=in_bias,
                      w1=w1_hwio, s1=s1, b1=b1,
                      w2=w2_hwio, s2=s2, b2=b2)

    # --- kernel-side params -------------------------------------------------
    imgs_per_step = choose_tiling(N, H)
    rows = imgs_per_step * H

    # Masked H-shift matrices: realize zero H padding (and per-image
    # boundaries of the flattened (N*H) row axis) as tiny MXU matmuls.
    i = np.arange(rows)[:, None]
    j = np.arange(rows)[None, :]
    s_up_m = ((j == i - 1) & (i % H != 0)).astype(np.float32)        # row h-1
    s_down_m = ((j == i + 1) & (i % H != H - 1)).astype(np.float32)  # row h+1
    shifts = jnp.asarray(np.stack([s_up_m, s_down_m]))

    # bf16 stacked block-circulant weights (halves the dominant HBM bytes and
    # doubles MXU rate; accumulation stays f32 in-kernel).
    # TODO(synk): for tiny batches the ~40x circulant inflation could be cut
    # further by building the band matrices in-kernel from the raw 3x3
    # weights; not worth the complexity at production batch sizes.
    w1s = jnp.asarray(make_banded_weights(w1_hwio, W), jnp.bfloat16)
    w2s = jnp.asarray(make_banded_weights(w2_hwio, W), jnp.bfloat16)

    # All six per-channel vectors packed into ONE small (8, PW) f32 array.
    pw = max(W * in_ch, W * out_ch, 128)
    pvec = np.zeros((8, pw), np.float32)
    pvec[0, :W * in_ch] = np.tile(np.asarray(in_scale), W)
    pvec[1, :W * in_ch] = np.tile(np.asarray(in_bias), W)
    pvec[2, :W * out_ch] = np.tile(np.asarray(s1), W)
    pvec[3, :W * out_ch] = np.tile(np.asarray(b1), W)
    pvec[4, :W * out_ch] = np.tile(np.asarray(s2), W)
    pvec[5, :W * out_ch] = np.tile(np.asarray(b2), W)

    kern_params = dict(shifts=shifts, w1s=w1s, w2s=w2s,
                       pvec=jnp.asarray(pvec))
    return ref_params, kern_params


# ---------------------------------------------------------------------------
# Pure-JAX reference (correctness check, full f32)
# ---------------------------------------------------------------------------
def ref_forward(x_nhwc, p):
    y = x_nhwc * p["in_scale"] + p["in_bias"]

    def block(y, w, s, b):
        y = jnp.pad(y, ((0, 0), (0, 0), (1, 1), (0, 0)), mode="wrap")  # circ W
        y = jnp.pad(y, ((0, 0), (1, 1), (0, 0), (0, 0)))               # zero H
        y = lax.conv_general_dilated(
            y, w, (1, 1), "VALID",
            dimension_numbers=("NHWC", "HWIO", "NHWC"),
            precision=lax.Precision.HIGHEST)
        y = y * s + b
        return jnp.where(y >= 0, y, NEG_SLOPE * y)

    y = block(y, p["w1"], p["s1"], p["b1"])
    y = block(y, p["w2"], p["s2"], p["b2"])
    return y


if __name__ == "__main__":
    N, in_ch, out_ch, H, W = 2, 4, 16, 16, 16
    key = jax.random.PRNGKey(0)
    kx, kpk = jax.random.split(key)

    x = jax.random.normal(kx, (N, in_ch, H, W), jnp.float32)   # NCHW like PyTorch
    x_nhwc = jnp.transpose(x, (0, 2, 3, 1))                    # -> NHWC

    ref_params, kern_params = make_params(kpk, in_ch, out_ch, H, W, N)

    out = jax.jit(inconv_forward)(x_nhwc, kern_params)
    out = jax.block_until_ready(out)

    ref = ref_forward(x_nhwc, ref_params)
    assert out.shape == (N, H, W, out_ch)
    max_err = float(jnp.max(jnp.abs(out - ref)))
    # bf16 GEMM operands (f32 accumulation) -> relaxed tolerance vs f32 ref.
    assert jnp.allclose(out, ref, atol=3e-2, rtol=3e-2), (
        f"mismatch vs JAX reference, max|err|={max_err}")

    # TODO(synk): BatchNorm is eval-mode (running stats folded); training-mode
    # batch-statistic computation is not implemented.
    print("KERNEL_OK")
</pallas_src>

<mosaic_0001>
module attributes {stable_mosaic.version = 11 : i64} {
  func.func @inconv_fused_kernel(%arg0: i32, %arg1: memref<16x64xf32, #tpu.memory_space<vmem>>, %arg2: memref<2x16x16xf32, #tpu.memory_space<vmem>>, %arg3: memref<192x256xbf16, #tpu.memory_space<vmem>>, %arg4: memref<768x256xbf16, #tpu.memory_space<vmem>>, %arg5: memref<8x256xf32, #tpu.memory_space<vmem>>, %arg6: memref<16x256xf32, #tpu.memory_space<vmem>>) attributes {dimension_semantics = [#tpu.dimension_semantics<parallel>], iteration_bounds = array<i64: 2>, scalar_prefetch = 0 : i64, scratch_operands = 0 : i64, tpu.core_type = #tpu.core_type<tc>, window_params = [{transform_indices = @transform_0, window_bounds = array<i64: 16, 64>}, {pipeline_mode = #tpu.pipeline_mode<synchronous>, transform_indices = @transform_1, window_bounds = array<i64: 2, 16, 16>}, {pipeline_mode = #tpu.pipeline_mode<synchronous>, transform_indices = @transform_2, window_bounds = array<i64: 192, 256>}, {pipeline_mode = #tpu.pipeline_mode<synchronous>, transform_indices = @transform_3, window_bounds = array<i64: 768, 256>}, {pipeline_mode = #tpu.pipeline_mode<synchronous>, transform_indices = @transform_4, window_bounds = array<i64: 8, 256>}, {transform_indices = @transform_5, window_bounds = array<i64: 16, 256>}]} {
    %c0 = arith.constant 0 : index
    %c0_0 = arith.constant 0 : index
    %c0_1 = arith.constant 0 : index
    %0 = vector.load %arg2[%c0, %c0_0, %c0_1] : memref<2x16x16xf32, #tpu.memory_space<vmem>>, vector<1x16x16xf32>
    %1 = vector.shape_cast %0 : vector<1x16x16xf32> to vector<16x16xf32>
    %c1 = arith.constant 1 : index
    %c0_2 = arith.constant 0 : index
    %c0_3 = arith.constant 0 : index
    %2 = vector.load %arg2[%c1, %c0_2, %c0_3] : memref<2x16x16xf32, #tpu.memory_space<vmem>>, vector<1x16x16xf32>
    %3 = vector.shape_cast %2 : vector<1x16x16xf32> to vector<16x16xf32>
    %c0_4 = arith.constant 0 : index
    %c0_5 = arith.constant 0 : index
    %4 = vector.load %arg1[%c0_4, %c0_5] : memref<16x64xf32, #tpu.memory_space<vmem>>, vector<16x64xf32>
    %c0_6 = arith.constant 0 : index
    %c0_7 = arith.constant 0 : index
    %5 = vector.load %arg5[%c0_6, %c0_7] : memref<8x256xf32, #tpu.memory_space<vmem>>, vector<1x64xf32>
    %6 = vector.broadcast %5 : vector<1x64xf32> to vector<16x64xf32>
    %7 = arith.mulf %4, %6 : vector<16x64xf32>
    %c1_8 = arith.constant 1 : index
    %c0_9 = arith.constant 0 : index
    %8 = vector.load %arg5[%c1_8, %c0_9] : memref<8x256xf32, #tpu.memory_space<vmem>>, vector<1x64xf32>
    %9 = vector.broadcast %8 : vector<1x64xf32> to vector<16x64xf32>
    %10 = arith.addf %7, %9 : vector<16x64xf32>
    %c2 = arith.constant 2 : index
    %c0_10 = arith.constant 0 : index
    %11 = vector.load %arg5[%c2, %c0_10] : memref<8x256xf32, #tpu.memory_space<vmem>>, vector<1x256xf32>
    %c3 = arith.constant 3 : index
    %c0_11 = arith.constant 0 : index
    %12 = vector.load %arg5[%c3, %c0_11] : memref<8x256xf32, #tpu.memory_space<vmem>>, vector<1x256xf32>
    %cst = arith.constant dense<0.000000e+00> : vector<16x64xf32>
    %13 = tpu.matmul %1, %10, %cst {dimension_numbers = #tpu.dot_dimension_numbers<[1], [0], [0], [1], [0, 0, 1, 1], [], []>} : vector<16x16xf32>, vector<16x64xf32>, vector<16x64xf32> -> vector<16x64xf32>
    %cst_12 = arith.constant dense<0.000000e+00> : vector<16x64xf32>
    %14 = tpu.matmul %3, %10, %cst_12 {dimension_numbers = #tpu.dot_dimension_numbers<[1], [0], [0], [1], [0, 0, 1, 1], [], []>} : vector<16x16xf32>, vector<16x64xf32>, vector<16x64xf32> -> vector<16x64xf32>
    %15 = tpu.concatenate %13, %10, %14 in 1 : vector<16x64xf32>, vector<16x64xf32>, vector<16x64xf32> -> vector<16x192xf32>
    %16 = arith.truncf %15 : vector<16x192xf32> to vector<16x192xbf16>
    %c0_13 = arith.constant 0 : index
    %c0_14 = arith.constant 0 : index
    %17 = vector.load %arg3[%c0_13, %c0_14] : memref<192x256xbf16, #tpu.memory_space<vmem>>, vector<192x256xbf16>
    %cst_15 = arith.constant dense<0.000000e+00> : vector<16x256xf32>
    %18 = tpu.matmul %16, %17, %cst_15 {dimension_numbers = #tpu.dot_dimension_numbers<[1], [0], [0], [1], [0, 0, 1, 1], [], []>} : vector<16x192xbf16>, vector<192x256xbf16>, vector<16x256xf32> -> vector<16x256xf32>
    %19 = vector.broadcast %11 : vector<1x256xf32> to vector<16x256xf32>
    %20 = arith.mulf %18, %19 : vector<16x256xf32>
    %21 = vector.broadcast %12 : vector<1x256xf32> to vector<16x256xf32>
    %22 = arith.addf %20, %21 : vector<16x256xf32>
    %cst_16 = arith.constant 0.00999999977 : f32
    %23 = vector.broadcast %cst_16 : f32 to vector<16x256xf32>
    %24 = arith.mulf %23, %22 : vector<16x256xf32>
    %25 = arith.maximumf %22, %24 : vector<16x256xf32>
    %c4 = arith.constant 4 : index
    %c0_17 = arith.constant 0 : index
    %26 = vector.load %arg5[%c4, %c0_17] : memref<8x256xf32, #tpu.memory_space<vmem>>, vector<1x256xf32>
    %c5 = arith.constant 5 : index
    %c0_18 = arith.constant 0 : index
    %27 = vector.load %arg5[%c5, %c0_18] : memref<8x256xf32, #tpu.memory_space<vmem>>, vector<1x256xf32>
    %cst_19 = arith.constant dense<0.000000e+00> : vector<16x256xf32>
    %28 = tpu.matmul %1, %25, %cst_19 {dimension_numbers = #tpu.dot_dimension_numbers<[1], [0], [0], [1], [0, 0, 1, 1], [], []>} : vector<16x16xf32>, vector<16x256xf32>, vector<16x256xf32> -> vector<16x256xf32>
    %cst_20 = arith.constant dense<0.000000e+00> : vector<16x256xf32>
    %29 = tpu.matmul %3, %25, %cst_20 {dimension_numbers = #tpu.dot_dimension_numbers<[1], [0], [0], [1], [0, 0, 1, 1], [], []>} : vector<16x16xf32>, vector<16x256xf32>, vector<16x256xf32> -> vector<16x256xf32>
    %30 = tpu.concatenate %28, %25, %29 in 1 : vector<16x256xf32>, vector<16x256xf32>, vector<16x256xf32> -> vector<16x768xf32>
    %31 = arith.truncf %30 : vector<16x768xf32> to vector<16x768xbf16>
    %c0_21 = arith.constant 0 : index
    %c0_22 = arith.constant 0 : index
    %32 = vector.load %arg4[%c0_21, %c0_22] : memref<768x256xbf16, #tpu.memory_space<vmem>>, vector<768x256xbf16>
    %cst_23 = arith.constant dense<0.000000e+00> : vector<16x256xf32>
    %33 = tpu.matmul %31, %32, %cst_23 {dimension_numbers = #tpu.dot_dimension_numbers<[1], [0], [0], [1], [0, 0, 1, 1], [], []>} : vector<16x768xbf16>, vector<768x256xbf16>, vector<16x256xf32> -> vector<16x256xf32>
    %34 = vector.broadcast %26 : vector<1x256xf32> to vector<16x256xf32>
    %35 = arith.mulf %33, %34 : vector<16x256xf32>
    %36 = vector.broadcast %27 : vector<1x256xf32> to vector<16x256xf32>
    %37 = arith.addf %35, %36 : vector<16x256xf32>
    %cst_24 = arith.constant 0.00999999977 : f32
    %38 = vector.broadcast %cst_24 : f32 to vector<16x256xf32>
    %39 = arith.mulf %38, %37 : vector<16x256xf32>
    %40 = arith.maximumf %37, %39 : vector<16x256xf32>
    %c0_25 = arith.constant 0 : index
    %c0_26 = arith.constant 0 : index
    %41 = vector.load %arg6[%c0_25, %c0_26] : memref<16x256xf32, #tpu.memory_space<vmem>>, vector<16x256xf32>
    tpu.vector_store %arg6[%c0_25, %c0_26], %40 {strides = array<i32>} : memref<16x256xf32, #tpu.memory_space<vmem>>, vector<16x256xf32>,
    return
  }
  func.func @transform_0(%arg0: i32) -> (i32, i32) {
    %c0_i32 = arith.constant 0 : i32
    %c0_i32_0 = arith.constant 0 : i32
    return %arg0, %c0_i32 : i32, i32
  }
  func.func @transform_1(%arg0: i32) -> (i32, i32, i32) {
    %c0_i32 = arith.constant 0 : i32
    %c0_i32_0 = arith.constant 0 : i32
    %c0_i32_1 = arith.constant 0 : i32
    %c0_i32_2 = arith.constant 0 : i32
    return %c0_i32, %c0_i32_0, %c0_i32_1 : i32, i32, i32
  }
  func.func @transform_2(%arg0: i32) -> (i32, i32) {
    %c0_i32 = arith.constant 0 : i32
    %c0_i32_0 = arith.constant 0 : i32
    %c0_i32_1 = arith.constant 0 : i32
    return %c0_i32, %c0_i32_0 : i32, i32
  }
  func.func @transform_3(%arg0: i32) -> (i32, i32) {
    %c0_i32 = arith.constant 0 : i32
    %c0_i32_0 = arith.constant 0 : i32
    %c0_i32_1 = arith.constant 0 : i32
    return %c0_i32, %c0_i32_0 : i32, i32
  }
  func.func @transform_4(%arg0: i32) -> (i32, i32) {
    %c0_i32 = arith.constant 0 : i32
    %c0_i32_0 = arith.constant 0 : i32
    %c0_i32_1 = arith.constant 0 : i32
    return %c0_i32, %c0_i32_0 : i32, i32
  }
  func.func @transform_5(%arg0: i32) -> (i32, i32) {
    %c0_i32 = arith.constant 0 : i32
    %c0_i32_0 = arith.constant 0 : i32
    return %arg0, %c0_i32 : i32, i32
  }
}

</mosaic_0001>

<llo_original>
// kernel: inconv_forward.1
$region0: #{inconv_forward.1}
  #allocation0 [shape = 'u32[]', space=smem, size = 0x4, offset = 0x4, fixed_abs, tag = 'smem constant byte address 0x4 - core index']
  #allocation1 [shape = 'u32[72,128]{1,0:T(1,128)}', space=vmem, size = 0x9000, scoped, tag = 'internal scratch']
  %s0 = inlined_call_operand.vmem [shape: f32[32,64], index: 0, kind: input, shape index: {}]
  %s1 = inlined_call_operand.vmem [shape: f32[2,16,16], index: 1, kind: input, shape index: {}]
  %s2 = inlined_call_operand.vmem [shape: bf16[192,256], index: 2, kind: input, shape index: {}]
  %s3 = inlined_call_operand.hbm [shape: bf16[768,256], index: 3, kind: input, shape index: {}]
  %s4 = inlined_call_operand.vmem [shape: f32[8,256], index: 4, kind: input, shape index: {}]
  %s5 = inlined_call_operand.vmem [shape: f32[32,256], index: 5, kind: output, shape index: {}]
  %s6 = sld [smem:[#allocation0]]
  $region57: #{inconv_forward.1} parent=0
    _
  %s8 = ssub.s32 1, %s6
  %s9 = scalar_select 0, %s8, %s6
  $region1: #{inconv_forward.1} parent=0
    #allocation2 [shape = 'u8[393216]{0}', space=vmem, size = 0x60000, scoped, tag = 'input window, operand 3, single buffered']
    #allocation3 [shape = 's32[2]{0}', space=sflag, size = 0x8, scoped, tag = 'scoped memory for inconv_forward.1']
    %10 = vsyncpa [#allocation3], 0
    loop: start=0, step=1, limit=4
    $region2: #{inconv_forward.1} parent=1 // loop_pre_header
      _
    $region3: #{inconv_forward.1} parent=1 // loop_header
      %s12 = sphi 0, %s16
      %p13 = scmp.ge.s32.totalorder %s12, 4
      %s22 = sphi 0, %s24
      %s25 = sphi 0, %s22
      %s26 = sphi 0, %s25
      %s42 = sphi 0, %s26
      %s46 = sphi 0, %s46
      %s48 = sphi 0, %s46
      %s49 = sphi 0, %s48
      %s63 = sphi 0, %s49
      %s67 = sphi 0, %s67
      %s69 = sphi 0, %s67
      %s70 = sphi 0, %s69
      %s84 = sphi 0, %s70
      %s88 = sphi 0, %s88
      %s90 = sphi 0, %s88
      %s91 = sphi 0, %s90
      %s105 = sphi 0, %s91
      %s109 = sphi 0, %s109
      %s111 = sphi 0, %s109
      %s112 = sphi 0, %s111
      %s126 = sphi 0, %s112
      %s132 = sphi 0, %s134
      %s135 = sphi 0, %s132
      %s136 = sphi 0, %s135
      %s152 = sphi 0, %s136
    $region4: #{inconv_forward.1} parent=1 // loop_header_branch
      %15 = sbr.rel (%p13) target = $region8
    $region5: #{inconv_forward.1} parent=1 // loop_body
      %s17 = ssub.s32 %s12, 1
      %s18 = ssub.s32 %s12, 2
      %s19 = sadd.s32 %s12, 1
      %s20 = ssub.s32 %s12, %s19
      %p21 = scmp.eq.s32.totalorder %s20, 0
      %s23 = sadd.s32 %s22, 1
      %s24 = scalar_select %p21, %s22, %s23
      %p27 = pneg %p21
      %p28 = scmp.eq.s32.totalorder %s12, 1
      %p29 = por %p27, %p28
      %p30 = scmp.ne.s32.totalorder %s22, %s25
      %p31 = scmp.eq.s32.totalorder %s12, 0
      %p32 = por %p30, %p31
      %p33 = scmp.ne.s32.totalorder %s22, %s25
      %p34 = scmp.eq.s32.totalorder %s17, 1
      %p35 = por %p33, %p34
      %p36 = scmp.ne.s32.totalorder %s25, %s26
      %p37 = scmp.eq.s32.totalorder %s17, 0
      %p38 = por %p36, %p37
      %p39 = scmp.ne.s32.totalorder %s25, %s26
      %p40 = scmp.eq.s32.totalorder %s18, 1
      %p41 = por %p39, %p40
      %p43 = scmp.ne.s32.totalorder %s26, %s42
      %p44 = scmp.eq.s32.totalorder %s18, 0
      %p45 = por %p43, %p44
      %s47 = sadd.s32 %s46, 1
      %p50 = scmp.eq.s32.totalorder %s12, 1
      %p51 = scmp.ne.s32.totalorder %s46, %s48
      %p52 = scmp.eq.s32.totalorder %s12, 0
      %p53 = por %p51, %p52
      %p54 = scmp.ne.s32.totalorder %s46, %s48
      %p55 = scmp.eq.s32.totalorder %s17, 1
      %p56 = por %p54, %p55
      %p57 = scmp.ne.s32.totalorder %s48, %s49
      %p58 = scmp.eq.s32.totalorder %s17, 0
      %p59 = por %p57, %p58
      %p60 = scmp.ne.s32.totalorder %s48, %s49
      %p61 = scmp.eq.s32.totalorder %s18, 1
      %p62 = por %p60, %p61
      %p64 = scmp.ne.s32.totalorder %s49, %s63
      %p65 = scmp.eq.s32.totalorder %s18, 0
      %p66 = por %p64, %p65
      %s68 = sadd.s32 %s67, 1
      %p71 = scmp.eq.s32.totalorder %s12, 1
      %p72 = scmp.ne.s32.totalorder %s67, %s69
      %p73 = scmp.eq.s32.totalorder %s12, 0
      %p74 = por %p72, %p73
      %p75 = scmp.ne.s32.totalorder %s67, %s69
      %p76 = scmp.eq.s32.totalorder %s17, 1
      %p77 = por %p75, %p76
      %p78 = scmp.ne.s32.totalorder %s69, %s70
      %p79 = scmp.eq.s32.totalorder %s17, 0
      %p80 = por %p78, %p79
      %p81 = scmp.ne.s32.totalorder %s69, %s70
      %p82 = scmp.eq.s32.totalorder %s18, 1
      %p83 = por %p81, %p82
      %p85 = scmp.ne.s32.totalorder %s70, %s84
      %p86 = scmp.eq.s32.totalorder %s18, 0
      %p87 = por %p85, %p86
      %s89 = sadd.s32 %s88, 1
      %p92 = scmp.eq.s32.totalorder %s12, 1
      %p93 = scmp.ne.s32.totalorder %s88, %s90
      %p94 = scmp.eq.s32.totalorder %s12, 0
      %p95 = por %p93, %p94
      %p96 = scmp.ne.s32.totalorder %s88, %s90
      %p97 = scmp.eq.s32.totalorder %s17, 1
      %p98 = por %p96, %p97
      %p99 = scmp.ne.s32.totalorder %s90, %s91
      %p100 = scmp.eq.s32.totalorder %s17, 0
      %p101 = por %p99, %p100
      %p102 = scmp.ne.s32.totalorder %s90, %s91
      %p103 = scmp.eq.s32.totalorder %s18, 1
      %p104 = por %p102, %p103
      %p106 = scmp.ne.s32.totalorder %s91, %s105
      %p107 = scmp.eq.s32.totalorder %s18, 0
      %p108 = por %p106, %p107
      %s110 = sadd.s32 %s109, 1
      %p113 = scmp.eq.s32.totalorder %s12, 1
      %p114 = scmp.ne.s32.totalorder %s109, %s111
      %p115 = scmp.eq.s32.totalorder %s12, 0
      %p116 = por %p114, %p115
      %p117 = scmp.ne.s32.totalorder %s109, %s111
      %p118 = scmp.eq.s32.totalorder %s17, 1
      %p119 = por %p117, %p118
      %p120 = scmp.ne.s32.totalorder %s111, %s112
      %p121 = scmp.eq.s32.totalorder %s17, 0
      %p122 = por %p120, %p121
      %p123 = scmp.ne.s32.totalorder %s111, %s112
      %p124 = scmp.eq.s32.totalorder %s18, 1
      %p125 = por %p123, %p124
      %p127 = scmp.ne.s32.totalorder %s112, %s126
      %p128 = scmp.eq.s32.totalorder %s18, 0
      %p129 = por %p127, %p128
      %s130 = ssub.s32 %s12, %s19
      %p131 = scmp.eq.s32.totalorder %s130, 0
      %s133 = sadd.s32 %s132, 1
      %s134 = scalar_select %p131, %s132, %s133
      %p137 = pneg %p131
      %p138 = scmp.eq.s32.totalorder %s12, 1
      %p139 = por %p137, %p138
      %p140 = scmp.ne.s32.totalorder %s132, %s135
      %p141 = scmp.eq.s32.totalorder %s12, 0
      %p142 = por %p140, %p141
      %p143 = scmp.ne.s32.totalorder %s132, %s135
      %p144 = scmp.eq.s32.totalorder %s17, 1
      %p145 = por %p143, %p144
      %p146 = scmp.ne.s32.totalorder %s135, %s136
      %p147 = scmp.eq.s32.totalorder %s17, 0
      %p148 = por %p146, %p147
      %p149 = scmp.ne.s32.totalorder %s135, %s136
      %p150 = scmp.eq.s32.totalorder %s18, 1
      %p151 = por %p149, %p150
      %p153 = scmp.ne.s32.totalorder %s136, %s152
      %p154 = scmp.eq.s32.totalorder %s18, 0
      %p155 = por %p153, %p154
      %p156 = scmp.le.s32.totalorder 1, %s12
      %p157 = scmp.lt.s32.totalorder %s12, 3
      %p158 = pnand %p156, %p157
      %p159 = pneg %p158
      // Predicated region
      $region9: #{inconv_forward.1} parent=5 // pred_check
        _
      $region10: #{inconv_forward.1} parent=5 // pred_check_branch
        %161 = sbr.rel (%p158) target = $region12
      $region11: #{inconv_forward.1} parent=5 // pred_region
        %s162 = ssub.s32 %s12, 1
        // Predicated region
        $region13: #{inconv_forward.1} parent=11 // pred_check
          %p163 = pneg %p59
        $region14: #{inconv_forward.1} parent=11 // pred_check_branch
          %165 = sbr.rel (%p163) target = $region16
        $region15: #{inconv_forward.1} parent=11 // pred_region
          _
        $region16: #{inconv_forward.1} parent=11 // pred_fallthru
          _
        // Predicated region
        $region17: #{inconv_forward.1} parent=11 // pred_check
          %p166 = pneg %p80
        $region18: #{inconv_forward.1} parent=11 // pred_check_branch
          %168 = sbr.rel (%p166) target = $region20
        $region19: #{inconv_forward.1} parent=11 // pred_region
          _
        $region20: #{inconv_forward.1} parent=11 // pred_fallthru
          _
        // Predicated region
        $region21: #{inconv_forward.1} parent=11 // pred_check
          %p169 = pneg %p101
        $region22: #{inconv_forward.1} parent=11 // pred_check_branch
          %171 = sbr.rel (%p169) target = $region24
        $region23: #{inconv_forward.1} parent=11 // pred_region
          %173 = vsyncadd [#allocation3], 0
          %s174 = sshll.u32 %s3, 4
          %s175 = int_to_ptr.hbm [resolvable:$true] %s174
          %s176 = sshll.u32 [#allocation2], 4
          %s177 = int_to_ptr.vmem [resolvable:$true] %s176
          %182 = dma.hbm_to_vmem [thread:$0]  %s175, 12288, %s177, [#allocation3], 128, 128, 8
        $region24: #{inconv_forward.1} parent=11 // pred_fallthru
          _
        // Predicated region
        $region25: #{inconv_forward.1} parent=11 // pred_check
          %p183 = pneg %p122
        $region26: #{inconv_forward.1} parent=11 // pred_check_branch
          %185 = sbr.rel (%p183) target = $region28
        $region27: #{inconv_forward.1} parent=11 // pred_region
          _
        $region28: #{inconv_forward.1} parent=11 // pred_fallthru
          _
      $region12: #{inconv_forward.1} parent=5 // pred_fallthru
        _
      %p186 = scmp.lt.s32.totalorder %s12, 2
      // Predicated region
      $region29: #{inconv_forward.1} parent=5 // pred_check
        %p187 = pneg %p186
      $region30: #{inconv_forward.1} parent=5 // pred_check_branch
        %189 = sbr.rel (%p187) target = $region32
      $region31: #{inconv_forward.1} parent=5 // pred_region
        // Predicated region
        $region33: #{inconv_forward.1} parent=31 // pred_check
          %p190 = pneg %p32
        $region34: #{inconv_forward.1} parent=31 // pred_check_branch
          %192 = sbr.rel (%p190) target = $region36
        $region35: #{inconv_forward.1} parent=31 // pred_region
          %s193 = smul.u32 2, %s12
          %p194 = scmp.lt.s32.totalorder %s193, 3
          %s195 = scalar_select %p194, %s193, 3
          %s196 = smul.addr %s195, 8
          %s197 = scalar_lea.vmem %s0, %s196
          %s198 = smul.u32 2, %s12
        $region36: #{inconv_forward.1} parent=31 // pred_fallthru
          _
      $region32: #{inconv_forward.1} parent=5 // pred_fallthru
        _
      %p199 = scmp.le.s32.totalorder 1, %s12
      %p200 = scmp.lt.s32.totalorder %s12, 3
      %p201 = pnand %p199, %p200
      %p202 = pneg %p201
      // Predicated region
      $region37: #{inconv_forward.1} parent=5 // pred_check
        _
      $region38: #{inconv_forward.1} parent=5 // pred_check_branch
        %204 = sbr.rel (%p201) target = $region40
      $region39: #{inconv_forward.1} parent=5 // pred_region
        %s205 = ssub.s32 %s12, 1
        // Predicated region
        $region41: #{inconv_forward.1} parent=39 // pred_check
          %p206 = pneg %p101
        $region42: #{inconv_forward.1} parent=39 // pred_check_branch
          %208 = sbr.rel (%p206) target = $region44
        $region43: #{inconv_forward.1} parent=39 // pred_region
          %210 = dma.done [#allocation3], 12288
        $region44: #{inconv_forward.1} parent=39 // pred_fallthru
          _
        %s211 = smul.u32 2, %s17
        %p212 = scmp.lt.s32.totalorder %s211, 3
        %s213 = scalar_select %p212, %s211, 3
        %s214 = smul.addr %s213, 8
        %s215 = scalar_lea.vmem %s0, %s214
        %p216 = pneg %p38
        %p217 = pneg %p35
        %p218 = pneg %p59
        %p219 = pneg %p56
        %p220 = pneg %p80
        %p221 = pneg %p77
        %p222 = pneg %p101
        %p223 = pneg %p98
        %p224 = pneg %p122
        %p225 = pneg %p119
        %p226 = pneg %p148
        %p227 = pneg %p145
        %s228 = smul.u32 2, %s17
        %p229 = scmp.lt.s32.totalorder %s228, 3
        %s230 = scalar_select %p229, %s228, 3
        %s231 = smul.addr %s230, 2
        %s232 = smul.addr %s231, 8
        %s233 = scalar_lea.vmem %s5, %s232
        %s234 = smul.u32 2, %s17
        %p235 = scmp.lt.s32.totalorder %s234, 3
        %s236 = scalar_select %p235, %s234, 3
        %s237 = smul.addr %s236, 8
        %s238 = scalar_lea.vmem %s0, %s237
        %s239 = smul.u32 2, %s17
        %s240 = smul.u32 2, %s17
        %p241 = scmp.lt.s32.totalorder %s240, 3
        %s242 = scalar_select %p241, %s240, 3
        %s243 = smul.addr %s242, 2
        %s244 = smul.addr %s243, 8
        %s245 = scalar_lea.vmem %s5, %s244
        %s246 = smul.u32 2, %s17
        %v248 = vld [vmem:[%s1] sm:$0xff]
        %v249 = vld [vmem:[%s1 + $0x8] sm:$0xff]
        %s250 = scalar_lea.vmem %s1, 16
        %v251 = vld [vmem:[%s250] sm:$0xff]
        %v252 = vld [vmem:[%s250 + $0x8] sm:$0xff]
        %v253 = vld [vmem:[%s238] sm:$0xff]
        %v254 = vld [vmem:[%s238 + $0x8] sm:$0xff]
        %v255 = vld [vmem:[%s4] ss:$0 sm:$0xff]
        %v256 = vmul.f32 %v253, %v255
        %v257 = vmul.f32 %v254, %v255
        %v258 = vld [vmem:[%s4 + $0x1] ss:$0 sm:$0xff]
        %v259 = vadd.f32 %v256, %v258
        %v260 = vadd.f32 %v257, %v258
        %s261 = scalar_lea.vmem %s4, 2
        %v262 = vld [vmem:[%s261] ss:$8 sm:$0x3]
        %s263 = scalar_lea.vmem %s4, 3
        %v264 = vld [vmem:[%s263] ss:$8 sm:$0x3]
        %vm265 = vcmask 130048
        %v267 = vsel %vm265, %v248, 0
        %v270 = vsel %vm265, %v249, 0
        %272 = vmatpush.msra.mxu0 0.0
        %273 = vmatpush.msra.mxu0 0.0
        %274 = vmatpush.msra.mxu0 0.0
        %275 = vmatpush.msra.mxu0 0.0
        %276 = vmatpush.msra.mxu0 0.0
        %277 = vmatpush.msra.mxu0 0.0
        %278 = vmatpush.msra.mxu0 0.0
        %279 = vmatpush.msra.mxu0 0.0
        %280 = vmatpush.msra.mxu0 0.0
        %281 = vmatpush.msra.mxu0 0.0
        %282 = vmatpush.msra.mxu0 0.0
        %283 = vmatpush.msra.mxu0 0.0
        %284 = vmatpush.msra.mxu0 0.0
        %285 = vmatpush.msra.mxu0 0.0
        %286 = vmatpush.msra.mxu0 %v260
        %287 = vmatpush.msra.mxu0 %v259
        %288 = vmatmul.f32.gmra.mxu0 %v267
        %v289 = vpop.f32.mrf.mxu0
        %v290 = vadd.f32 0.0, %v289
        %291 = vmatmul.f32.gmra.mxu0 %v270
        %v292 = vpop.f32.mrf.mxu0
        %v293 = vadd.f32 0.0, %v292
        %294 = vdwg.mxu0
        %v296 = vsel %vm265, %v251, 0
        %v299 = vsel %vm265, %v252, 0
        %301 = vmatpush.msra.mxu0 0.0
        %302 = vmatpush.msra.mxu0 0.0
        %303 = vmatpush.msra.mxu0 0.0
        %304 = vmatpush.msra.mxu0 0.0
        %305 = vmatpush.msra.mxu0 0.0
        %306 = vmatpush.msra.mxu0 0.0
        %307 = vmatpush.msra.mxu0 0.0
        %308 = vmatpush.msra.mxu0 0.0
        %309 = vmatpush.msra.mxu0 0.0
        %310 = vmatpush.msra.mxu0 0.0
        %311 = vmatpush.msra.mxu0 0.0
        %312 = vmatpush.msra.mxu0 0.0
        %313 = vmatpush.msra.mxu0 0.0
        %314 = vmatpush.msra.mxu0 0.0
        %315 = vmatpush.msra.mxu0 %v260
        %316 = vmatpush.msra.mxu0 %v259
        %317 = vmatmul.f32.gmra.mxu0 %v296
        %v318 = vpop.f32.mrf.mxu0
        %v319 = vadd.f32 0.0, %v318
        %320 = vmatmul.f32.gmra.mxu0 %v299
        %v321 = vpop.f32.mrf.mxu0
        %v322 = vadd.f32 0.0, %v321
        %323 = vdwg.mxu0
        %326 = vrot.lane.b32.xlu0 %v259, 64
        %v327 = vpop.permute.xlu0 %326
        %328 = vrot.lane.b32.xlu0 %v260, 64
        %v329 = vpop.permute.xlu0 %328
        %vm332 = vcmask 523264
        %v333 = vsel %vm332, %v290, %v327
        %v334 = vsel %vm332, %v293, %v329
        %v335 = vpack.c.bf16 %v334, %v333
        %v336 = vpack.c.bf16 %v322, %v319
        %v337 = vld [vmem:[%s2] sm:$0xff]
        %v338 = vld [vmem:[%s2 + $0x8] sm:$0xff]
        %v339 = vld [vmem:[%s2 + $0x10] sm:$0xff]
        %v340 = vld [vmem:[%s2 + $0x18] sm:$0xff]
        %v341 = vld [vmem:[%s2 + $0x20] sm:$0xff]
        %v342 = vld [vmem:[%s2 + $0x28] sm:$0xff]
        %v343 = vld [vmem:[%s2 + $0x30] sm:$0xff]
        %v344 = vld [vmem:[%s2 + $0x38] sm:$0xff]
        %v345 = vld [vmem:[%s2 + $0x40] sm:$0xff]
        %v346 = vld [vmem:[%s2 + $0x48] sm:$0xff]
        %v347 = vld [vmem:[%s2 + $0x50] sm:$0xff]
        %v348 = vld [vmem:[%s2 + $0x58] sm:$0xff]
        %v349 = vld [vmem:[%s2 + $0x60] sm:$0xff]
        %v350 = vld [vmem:[%s2 + $0x68] sm:$0xff]
        %v351 = vld [vmem:[%s2 + $0x70] sm:$0xff]
        %v352 = vld [vmem:[%s2 + $0x78] sm:$0xff]
        %v353 = vld [vmem:[%s2 + $0x80] sm:$0xff]
        %v354 = vld [vmem:[%s2 + $0x88] sm:$0xff]
        %v355 = vld [vmem:[%s2 + $0x90] sm:$0xff]
        %v356 = vld [vmem:[%s2 + $0x98] sm:$0xff]
        %v357 = vld [vmem:[%s2 + $0xa0] sm:$0xff]
        %v358 = vld [vmem:[%s2 + $0xa8] sm:$0xff]
        %v359 = vld [vmem:[%s2 + $0xb0] sm:$0xff]
        %v360 = vld [vmem:[%s2 + $0xb8] sm:$0xff]
        %v385 = vunpack.c.l.b16 %v337
        %v386 = vunpack.c.h.b16 %v337
        %v387 = vunpack.c.l.b16 %v338
        %v388 = vunpack.c.h.b16 %v338
        %v389 = vunpack.c.l.b16 %v339
        %v390 = vunpack.c.h.b16 %v339
        %v391 = vunpack.c.l.b16 %v340
        %v392 = vunpack.c.h.b16 %v340
        %v393 = vunpack.c.l.b16 %v341
        %v394 = vunpack.c.h.b16 %v341
        %v395 = vunpack.c.l.b16 %v342
        %v396 = vunpack.c.h.b16 %v342
        %v397 = vunpack.c.l.b16 %v343
        %v398 = vunpack.c.h.b16 %v343
        %v399 = vunpack.c.l.b16 %v344
        %v400 = vunpack.c.h.b16 %v344
        %v401 = vunpack.c.l.b16 %v345
        %v402 = vunpack.c.h.b16 %v345
        %v403 = vunpack.c.l.b16 %v346
        %v404 = vunpack.c.h.b16 %v346
        %v405 = vunpack.c.l.b16 %v347
        %v406 = vunpack.c.h.b16 %v347
        %v407 = vunpack.c.l.b16 %v348
        %v408 = vunpack.c.h.b16 %v348
        %v409 = vunpack.c.l.b16 %v349
        %v410 = vunpack.c.h.b16 %v349
        %v411 = vunpack.c.l.b16 %v350
        %v412 = vunpack.c.h.b16 %v350
        %v413 = vunpack.c.l.b16 %v351
        %v414 = vunpack.c.h.b16 %v351
        %v415 = vunpack.c.l.b16 %v352
        %v416 = vunpack.c.h.b16 %v352
        %v417 = vunpack.c.l.b16 %v353
        %v418 = vunpack.c.h.b16 %v353
        %v419 = vunpack.c.l.b16 %v354
        %v420 = vunpack.c.h.b16 %v354
        %v421 = vunpack.c.l.b16 %v355
        %v422 = vunpack.c.h.b16 %v355
        %v423 = vunpack.c.l.b16 %v356
        %v424 = vunpack.c.h.b16 %v356
        %v425 = vunpack.c.l.b16 %v357
        %v426 = vunpack.c.h.b16 %v357
        %v427 = vunpack.c.l.b16 %v358
        %v428 = vunpack.c.h.b16 %v358
        %v429 = vunpack.c.l.b16 %v359
        %v430 = vunpack.c.h.b16 %v359
        %v431 = vunpack.c.l.b16 %v360
        %v432 = vunpack.c.h.b16 %v360
        %v433 = vpack.c.b16 %v387, %v385
        %v434 = vpack.c.b16 %v388, %v386
        %v435 = vpack.c.b16 %v391, %v389
        %v436 = vpack.c.b16 %v392, %v390
        %v437 = vpack.c.b16 %v395, %v393
        %v438 = vpack.c.b16 %v396, %v394
        %v439 = vpack.c.b16 %v399, %v397
        %v440 = vpack.c.b16 %v400, %v398
        %v441 = vpack.c.b16 %v403, %v401
        %v442 = vpack.c.b16 %v404, %v402
        %v443 = vpack.c.b16 %v407, %v405
        %v444 = vpack.c.b16 %v408, %v406
        %v445 = vpack.c.b16 %v411, %v409
        %v446 = vpack.c.b16 %v412, %v410
        %v447 = vpack.c.b16 %v415, %v413
        %v448 = vpack.c.b16 %v416, %v414
        %v449 = vpack.c.b16 %v419, %v417
        %v450 = vpack.c.b16 %v420, %v418
        %v451 = vpack.c.b16 %v423, %v421
        %v452 = vpack.c.b16 %v424, %v422
        %v453 = vpack.c.b16 %v427, %v425
        %v454 = vpack.c.b16 %v428, %v426
        %v455 = vpack.c.b16 %v431, %v429
        %v456 = vpack.c.b16 %v432, %v430
        %v482 = vsel %vm332, %v336, 0
        %484 = vmatpush.bf16.msra.mxu0 %v447
        %485 = vmatpush.bf16.msra.mxu0 %v445
        %486 = vmatpush.bf16.msra.mxu0 %v443
        %487 = vmatpush.bf16.msra.mxu0 %v441
        %488 = vmatpush.bf16.msra.mxu0 %v439
        %489 = vmatpush.bf16.msra.mxu0 %v437
        %490 = vmatpush.bf16.msra.mxu0 %v435
        %491 = vmatpush.bf16.msra.mxu0 %v433
        %492 = vmatmul.bf16.gmra.mxu0 %v335
        %v493 = vpop.f32.mrf.mxu0
        %v494 = vadd.f32 0.0, %v493
        %v495 = vpop.f32.mrf.mxu0
        %v496 = vadd.f32 0.0, %v495
        %497 = vdwg.mxu0
        %498 = vmatpush.bf16.msra.mxu0 0
        %499 = vmatpush.bf16.msra.mxu0 0
        %500 = vmatpush.bf16.msra.mxu0 0
        %501 = vmatpush.bf16.msra.mxu0 0
        %502 = vmatpush.bf16.msra.mxu0 %v455
        %503 = vmatpush.bf16.msra.mxu0 %v453
        %504 = vmatpush.bf16.msra.mxu0 %v451
        %505 = vmatpush.bf16.msra.mxu0 %v449
        %506 = vmatmul.bf16.gmra.mxu0 %v482
        %v507 = vpop.f32.mrf.mxu0
        %v508 = vadd.f32 %v494, %v507
        %v509 = vpop.f32.mrf.mxu0
        %v510 = vadd.f32 %v496, %v509
        %511 = vdwg.mxu0
        %512 = vmatpush.bf16.msra.mxu0 %v448
        %513 = vmatpush.bf16.msra.mxu0 %v446
        %514 = vmatpush.bf16.msra.mxu0 %v444
        %515 = vmatpush.bf16.msra.mxu0 %v442
        %516 = vmatpush.bf16.msra.mxu0 %v440
        %517 = vmatpush.bf16.msra.mxu0 %v438
        %518 = vmatpush.bf16.msra.mxu0 %v436
        %519 = vmatpush.bf16.msra.mxu0 %v434
        %520 = vmatmul.bf16.gmra.mxu0 %v335
        %v521 = vpop.f32.mrf.mxu0
        %v522 = vadd.f32 0.0, %v521
        %v523 = vpop.f32.mrf.mxu0
        %v524 = vadd.f32 0.0, %v523
        %525 = vdwg.mxu0
        %526 = vmatpush.bf16.msra.mxu0 0
        %527 = vmatpush.bf16.msra.mxu0 0
        %528 = vmatpush.bf16.msra.mxu0 0
        %529 = vmatpush.bf16.msra.mxu0 0
        %530 = vmatpush.bf16.msra.mxu0 %v456
        %531 = vmatpush.bf16.msra.mxu0 %v454
        %532 = vmatpush.bf16.msra.mxu0 %v452
        %533 = vmatpush.bf16.msra.mxu0 %v450
        %534 = vmatmul.bf16.gmra.mxu0 %v482
        %v535 = vpop.f32.mrf.mxu0
        %v536 = vadd.f32 %v522, %v535
        %v537 = vpop.f32.mrf.mxu0
        %v538 = vadd.f32 %v524, %v537
        %539 = vdwg.mxu0
        %v541 = vperm.slane %v262, 0
        %v542 = vperm.slane %v262, 1
        %v545 = vmul.f32 %v508, %v541
        %v546 = vmul.f32 %v536, %v542
        %v547 = vmul.f32 %v510, %v541
        %v548 = vmul.f32 %v538, %v542
        %v550 = vperm.slane %v264, 0
        %v551 = vperm.slane %v264, 1
        %v554 = vadd.f32 %v545, %v550
        %v555 = vadd.f32 %v546, %v551
        %v556 = vadd.f32 %v547, %v550
        %v557 = vadd.f32 %v548, %v551
        %v558 = vmul.f32 %v554, 0.01
        %v559 = vmul.f32 %v555, 0.01
        %v560 = vmul.f32 %v556, 0.01
        %v561 = vmul.f32 %v557, 0.01
        %v562 = vmax.f32 %v554, %v558
        %v563 = vmax.f32 %v555, %v559
        %v564 = vmax.f32 %v556, %v560
        %v565 = vmax.f32 %v557, %v561
        %s566 = scalar_lea.vmem %s4, 4
        %v567 = vld [vmem:[%s566] ss:$8 sm:$0x3]
        %s568 = scalar_lea.vmem %s4, 5
        %v569 = vld [vmem:[%s568] ss:$8 sm:$0x3]
        %570 = vmatpush.msra.mxu0 0.0
        %571 = vmatpush.msra.mxu0 0.0
        %572 = vmatpush.msra.mxu0 0.0
        %573 = vmatpush.msra.mxu0 0.0
        %574 = vmatpush.msra.mxu0 0.0
        %575 = vmatpush.msra.mxu0 0.0
        %576 = vmatpush.msra.mxu0 0.0
        %577 = vmatpush.msra.mxu0 0.0
        %578 = vmatpush.msra.mxu0 0.0
        %579 = vmatpush.msra.mxu0 0.0
        %580 = vmatpush.msra.mxu0 0.0
        %581 = vmatpush.msra.mxu0 0.0
        %582 = vmatpush.msra.mxu0 0.0
        %583 = vmatpush.msra.mxu0 0.0
        %584 = vmatpush.msra.mxu0 %v564
        %585 = vmatpush.msra.mxu0 %v562
        %586 = vmatmul.f32.gmra.mxu0 %v267
        %v587 = vpop.f32.mrf.mxu0
        %v588 = vadd.f32 0.0, %v587
        %589 = vmatmul.f32.gmra.mxu0 %v270
        %v590 = vpop.f32.mrf.mxu0
        %v591 = vadd.f32 0.0, %v590
        %592 = vdwg.mxu0
        %593 = vmatpush.msra.mxu0 0.0
        %594 = vmatpush.msra.mxu0 0.0
        %595 = vmatpush.msra.mxu0 0.0
        %596 = vmatpush.msra.mxu0 0.0
        %597 = vmatpush.msra.mxu0 0.0
        %598 = vmatpush.msra.mxu0 0.0
        %599 = vmatpush.msra.mxu0 0.0
        %600 = vmatpush.msra.mxu0 0.0
        %601 = vmatpush.msra.mxu0 0.0
        %602 = vmatpush.msra.mxu0 0.0
        %603 = vmatpush.msra.mxu0 0.0
        %604 = vmatpush.msra.mxu0 0.0
        %605 = vmatpush.msra.mxu0 0.0
        %606 = vmatpush.msra.mxu0 0.0
        %607 = vmatpush.msra.mxu0 %v565
        %608 = vmatpush.msra.mxu0 %v563
        %609 = vmatmul.f32.gmra.mxu0 %v267
        %v610 = vpop.f32.mrf.mxu0
        %v611 = vadd.f32 0.0, %v610
        %612 = vmatmul.f32.gmra.mxu0 %v270
        %v613 = vpop.f32.mrf.mxu0
        %v614 = vadd.f32 0.0, %v613
        %615 = vdwg.mxu0
        %616 = vmatpush.msra.mxu0 0.0
        %617 = vmatpush.msra.mxu0 0.0
        %618 = vmatpush.msra.mxu0 0.0
        %619 = vmatpush.msra.mxu0 0.0
        %620 = vmatpush.msra.mxu0 0.0
        %621 = vmatpush.msra.mxu0 0.0
        %622 = vmatpush.msra.mxu0 0.0
        %623 = vmatpush.msra.mxu0 0.0
        %624 = vmatpush.msra.mxu0 0.0
        %625 = vmatpush.msra.mxu0 0.0
        %626 = vmatpush.msra.mxu0 0.0
        %627 = vmatpush.msra.mxu0 0.0
        %628 = vmatpush.msra.mxu0 0.0
        %629 = vmatpush.msra.mxu0 0.0
        %630 = vmatpush.msra.mxu0 %v564
        %631 = vmatpush.msra.mxu0 %v562
        %632 = vmatmul.f32.gmra.mxu0 %v296
        %v633 = vpop.f32.mrf.mxu0
        %v634 = vadd.f32 0.0, %v633
        %635 = vmatmul.f32.gmra.mxu0 %v299
        %v636 = vpop.f32.mrf.mxu0
        %v637 = vadd.f32 0.0, %v636
        %638 = vdwg.mxu0
        %639 = vmatpush.msra.mxu0 0.0
        %640 = vmatpush.msra.mxu0 0.0
        %641 = vmatpush.msra.mxu0 0.0
        %642 = vmatpush.msra.mxu0 0.0
        %643 = vmatpush.msra.mxu0 0.0
        %644 = vmatpush.msra.mxu0 0.0
        %645 = vmatpush.msra.mxu0 0.0
        %646 = vmatpush.msra.mxu0 0.0
        %647 = vmatpush.msra.mxu0 0.0
        %648 = vmatpush.msra.mxu0 0.0
        %649 = vmatpush.msra.mxu0 0.0
        %650 = vmatpush.msra.mxu0 0.0
        %651 = vmatpush.msra.mxu0 0.0
        %652 = vmatpush.msra.mxu0 0.0
        %653 = vmatpush.msra.mxu0 %v565
        %654 = vmatpush.msra.mxu0 %v563
        %655 = vmatmul.f32.gmra.mxu0 %v296
        %v656 = vpop.f32.mrf.mxu0
        %v657 = vadd.f32 0.0, %v656
        %658 = vmatmul.f32.gmra.mxu0 %v299
        %v659 = vpop.f32.mrf.mxu0
        %v660 = vadd.f32 0.0, %v659
        %661 = vdwg.mxu0
        %v662 = vpack.c.bf16 %v591, %v588
        %v663 = vpack.c.bf16 %v614, %v611
        %v664 = vpack.c.bf16 %v564, %v562
        %v665 = vpack.c.bf16 %v565, %v563
        %v666 = vpack.c.bf16 %v637, %v634
        %v667 = vpack.c.bf16 %v660, %v657
        %v668 = vld [vmem:[#allocation2] sm:$0xff]
        %v669 = vld [vmem:[#allocation2 + $0x8] sm:$0xff]
        %v670 = vld [vmem:[#allocation2 + $0x10] sm:$0xff]
        %v671 = vld [vmem:[#allocation2 + $0x18] sm:$0xff]
        %v672 = vld [vmem:[#allocation2 + $0x20] sm:$0xff]
        %v673 = vld [vmem:[#allocation2 + $0x28] sm:$0xff]
        %v674 = vld [vmem:[#allocation2 + $0x30] sm:$0xff]
        %v675 = vld [vmem:[#allocation2 + $0x38] sm:$0xff]
        %v676 = vld [vmem:[#allocation2 + $0x40] sm:$0xff]
        %v677 = vld [vmem:[#allocation2 + $0x48] sm:$0xff]
        %v678 = vld [vmem:[#allocation2 + $0x50] sm:$0xff]
        %v679 = vld [vmem:[#allocation2 + $0x58] sm:$0xff]
        %v680 = vld [vmem:[#allocation2 + $0x60] sm:$0xff]
        %v681 = vld [vmem:[#allocation2 + $0x68] sm:$0xff]
        %v682 = vld [vmem:[#allocation2 + $0x70] sm:$0xff]
        %v683 = vld [vmem:[#allocation2 + $0x78] sm:$0xff]
        %v684 = vld [vmem:[#allocation2 + $0x80] sm:$0xff]
        %v685 = vld [vmem:[#allocation2 + $0x88] sm:$0xff]
        %v686 = vld [vmem:[#allocation2 + $0x90] sm:$0xff]
        %v687 = vld [vmem:[#allocation2 + $0x98] sm:$0xff]
        %v688 = vld [vmem:[#allocation2 + $0xa0] sm:$0xff]
        %v689 = vld [vmem:[#allocation2 + $0xa8] sm:$0xff]
        %v690 = vld [vmem:[#allocation2 + $0xb0] sm:$0xff]
        %v691 = vld [vmem:[#allocation2 + $0xb8] sm:$0xff]
        %v692 = vld [vmem:[#allocation2 + $0xc0] sm:$0xff]
        %v693 = vld [vmem:[#allocation2 + $0xc8] sm:$0xff]
        %v694 = vld [vmem:[#allocation2 + $0xd0] sm:$0xff]
        %v695 = vld [vmem:[#allocation2 + $0xd8] sm:$0xff]
        %v696 = vld [vmem:[#allocation2 + $0xe0] sm:$0xff]
        %v697 = vld [vmem:[#allocation2 + $0xe8] sm:$0xff]
        %v698 = vld [vmem:[#allocation2 + $0xf0] sm:$0xff]
        %v699 = vld [vmem:[#allocation2 + $0xf8] sm:$0xff]
        %v700 = vld [vmem:[#allocation2 + $0x100] sm:$0xff]
        %v701 = vld [vmem:[#allocation2 + $0x108] sm:$0xff]
        %v702 = vld [vmem:[#allocation2 + $0x110] sm:$0xff]
        %v703 = vld [vmem:[#allocation2 + $0x118] sm:$0xff]
        %v704 = vld [vmem:[#allocation2 + $0x120] sm:$0xff]
        %v705 = vld [vmem:[#allocation2 + $0x128] sm:$0xff]
        %v706 = vld [vmem:[#allocation2 + $0x130] sm:$0xff]
        %v707 = vld [vmem:[#allocation2 + $0x138] sm:$0xff]
        %v708 = vld [vmem:[#allocation2 + $0x140] sm:$0xff]
        %v709 = vld [vmem:[#allocation2 + $0x148] sm:$0xff]
        %v710 = vld [vmem:[#allocation2 + $0x150] sm:$0xff]
        %v711 = vld [vmem:[#allocation2 + $0x158] sm:$0xff]
        %v712 = vld [vmem:[#allocation2 + $0x160] sm:$0xff]
        %v713 = vld [vmem:[#allocation2 + $0x168] sm:$0xff]
        %v714 = vld [vmem:[#allocation2 + $0x170] sm:$0xff]
        %v715 = vld [vmem:[#allocation2 + $0x178] sm:$0xff]
        %v716 = vld [vmem:[#allocation2 + $0x180] sm:$0xff]
        %v717 = vld [vmem:[#allocation2 + $0x188] sm:$0xff]
        %v718 = vld [vmem:[#allocation2 + $0x190] sm:$0xff]
        %v719 = vld [vmem:[#allocation2 + $0x198] sm:$0xff]
        %v720 = vld [vmem:[#allocation2 + $0x1a0] sm:$0xff]
        %v721 = vld [vmem:[#allocation2 + $0x1a8] sm:$0xff]
        %v722 = vld [vmem:[#allocation2 + $0x1b0] sm:$0xff]
        %v723 = vld [vmem:[#allocation2 + $0x1b8] sm:$0xff]
        %v724 = vld [vmem:[#allocation2 + $0x1c0] sm:$0xff]
        %v725 = vld [vmem:[#allocation2 + $0x1c8] sm:$0xff]
        %v726 = vld [vmem:[#allocation2 + $0x1d0] sm:$0xff]
        %v727 = vld [vmem:[#allocation2 + $0x1d8] sm:$0xff]
        %v728 = vld [vmem:[#allocation2 + $0x1e0] sm:$0xff]
        %v729 = vld [vmem:[#allocation2 + $0x1e8] sm:$0xff]
        %v730 = vld [vmem:[#allocation2 + $0x1f0] sm:$0xff]
        %v731 = vld [vmem:[#allocation2 + $0x1f8] sm:$0xff]
        %v732 = vld [vmem:[#allocation2 + $0x200] sm:$0xff]
        %v733 = vld [vmem:[#allocation2 + $0x208] sm:$0xff]
        %v734 = vld [vmem:[#allocation2 + $0x210] sm:$0xff]
        %v735 = vld [vmem:[#allocation2 + $0x218] sm:$0xff]
        %v736 = vld [vmem:[#allocation2 + $0x220] sm:$0xff]
        %v737 = vld [vmem:[#allocation2 + $0x228] sm:$0xff]
        %v738 = vld [vmem:[#allocation2 + $0x230] sm:$0xff]
        %v739 = vld [vmem:[#allocation2 + $0x238] sm:$0xff]
        %v740 = vld [vmem:[#allocation2 + $0x240] sm:$0xff]
        %v741 = vld [vmem:[#allocation2 + $0x248] sm:$0xff]
        %v742 = vld [vmem:[#allocation2 + $0x250] sm:$0xff]
        %v743 = vld [vmem:[#allocation2 + $0x258] sm:$0xff]
        %v744 = vld [vmem:[#allocation2 + $0x260] sm:$0xff]
        %v745 = vld [vmem:[#allocation2 + $0x268] sm:$0xff]
        %v746 = vld [vmem:[#allocation2 + $0x270] sm:$0xff]
        %v747 = vld [vmem:[#allocation2 + $0x278] sm:$0xff]
        %v748 = vld [vmem:[#allocation2 + $0x280] sm:$0xff]
        %v749 = vld [vmem:[#allocation2 + $0x288] sm:$0xff]
        %v750 = vld [vmem:[#allocation2 + $0x290] sm:$0xff]
        %v751 = vld [vmem:[#allocation2 + $0x298] sm:$0xff]
        %v752 = vld [vmem:[#allocation2 + $0x2a0] sm:$0xff]
        %v753 = vld [vmem:[#allocation2 + $0x2a8] sm:$0xff]
        %v754 = vld [vmem:[#allocation2 + $0x2b0] sm:$0xff]
        %v755 = vld [vmem:[#allocation2 + $0x2b8] sm:$0xff]
        %v756 = vld [vmem:[#allocation2 + $0x2c0] sm:$0xff]
        %v757 = vld [vmem:[#allocation2 + $0x2c8] sm:$0xff]
        %v758 = vld [vmem:[#allocation2 + $0x2d0] sm:$0xff]
        %v759 = vld [vmem:[#allocation2 + $0x2d8] sm:$0xff]
        %v760 = vld [vmem:[#allocation2 + $0x2e0] sm:$0xff]
        %v761 = vld [vmem:[#allocation2 + $0x2e8] sm:$0xff]
        %v762 = vld [vmem:[#allocation2 + $0x2f0] sm:$0xff]
        %v763 = vld [vmem:[#allocation2 + $0x2f8] sm:$0xff]
        %v860 = vunpack.c.l.b16 %v668
        %v861 = vunpack.c.h.b16 %v668
        %v862 = vunpack.c.l.b16 %v669
        %v863 = vunpack.c.h.b16 %v669
        %v864 = vunpack.c.l.b16 %v670
        %v865 = vunpack.c.h.b16 %v670
        %v866 = vunpack.c.l.b16 %v671
        %v867 = vunpack.c.h.b16 %v671
        %v868 = vunpack.c.l.b16 %v672
        %v869 = vunpack.c.h.b16 %v672
        %v870 = vunpack.c.l.b16 %v673
        %v871 = vunpack.c.h.b16 %v673
        %v872 = vunpack.c.l.b16 %v674
        %v873 = vunpack.c.h.b16 %v674
        %v874 = vunpack.c.l.b16 %v675
        %v875 = vunpack.c.h.b16 %v675
        %v876 = vunpack.c.l.b16 %v676
        %v877 = vunpack.c.h.b16 %v676
        %v878 = vunpack.c.l.b16 %v677
        %v879 = vunpack.c.h.b16 %v677
        %v880 = vunpack.c.l.b16 %v678
        %v881 = vunpack.c.h.b16 %v678
        %v882 = vunpack.c.l.b16 %v679
        %v883 = vunpack.c.h.b16 %v679
        %v884 = vunpack.c.l.b16 %v680
        %v885 = vunpack.c.h.b16 %v680
        %v886 = vunpack.c.l.b16 %v681
        %v887 = vunpack.c.h.b16 %v681
        %v888 = vunpack.c.l.b16 %v682
        %v889 = vunpack.c.h.b16 %v682
        %v890 = vunpack.c.l.b16 %v683
        %v891 = vunpack.c.h.b16 %v683
        %v892 = vunpack.c.l.b16 %v684
        %v893 = vunpack.c.h.b16 %v684
        %v894 = vunpack.c.l.b16 %v685
        %v895 = vunpack.c.h.b16 %v685
        %v896 = vunpack.c.l.b16 %v686
        %v897 = vunpack.c.h.b16 %v686
        %v898 = vunpack.c.l.b16 %v687
        %v899 = vunpack.c.h.b16 %v687
        %v900 = vunpack.c.l.b16 %v688
        %v901 = vunpack.c.h.b16 %v688
        %v902 = vunpack.c.l.b16 %v689
        %v903 = vunpack.c.h.b16 %v689
        %v904 = vunpack.c.l.b16 %v690
        %v905 = vunpack.c.h.b16 %v690
        %v906 = vunpack.c.l.b16 %v691
        %v907 = vunpack.c.h.b16 %v691
        %v908 = vunpack.c.l.b16 %v692
        %v909 = vunpack.c.h.b16 %v692
        %v910 = vunpack.c.l.b16 %v693
        %v911 = vunpack.c.h.b16 %v693
        %v912 = vunpack.c.l.b16 %v694
        %v913 = vunpack.c.h.b16 %v694
        %v914 = vunpack.c.l.b16 %v695
        %v915 = vunpack.c.h.b16 %v695
        %v916 = vunpack.c.l.b16 %v696
        %v917 = vunpack.c.h.b16 %v696
        %v918 = vunpack.c.l.b16 %v697
        %v919 = vunpack.c.h.b16 %v697
        %v920 = vunpack.c.l.b16 %v698
        %v921 = vunpack.c.h.b16 %v698
        %v922 = vunpack.c.l.b16 %v699
        %v923 = vunpack.c.h.b16 %v699
        %v924 = vunpack.c.l.b16 %v700
        %v925 = vunpack.c.h.b16 %v700
        %v926 = vunpack.c.l.b16 %v701
        %v927 = vunpack.c.h.b16 %v701
        %v928 = vunpack.c.l.b16 %v702
        %v929 = vunpack.c.h.b16 %v702
        %v930 = vunpack.c.l.b16 %v703
        %v931 = vunpack.c.h.b16 %v703
        %v932 = vunpack.c.l.b16 %v704
        %v933 = vunpack.c.h.b16 %v704
        %v934 = vunpack.c.l.b16 %v705
        %v935 = vunpack.c.h.b16 %v705
        %v936 = vunpack.c.l.b16 %v706
        %v937 = vunpack.c.h.b16 %v706
        %v938 = vunpack.c.l.b16 %v707
        %v939 = vunpack.c.h.b16 %v707
        %v940 = vunpack.c.l.b16 %v708
        %v941 = vunpack.c.h.b16 %v708
        %v942 = vunpack.c.l.b16 %v709
        %v943 = vunpack.c.h.b16 %v709
        %v944 = vunpack.c.l.b16 %v710
        %v945 = vunpack.c.h.b16 %v710
        %v946 = vunpack.c.l.b16 %v711
        %v947 = vunpack.c.h.b16 %v711
        %v948 = vunpack.c.l.b16 %v712
        %v949 = vunpack.c.h.b16 %v712
        %v950 = vunpack.c.l.b16 %v713
        %v951 = vunpack.c.h.b16 %v713
        %v952 = vunpack.c.l.b16 %v714
        %v953 = vunpack.c.h.b16 %v714
        %v954 = vunpack.c.l.b16 %v715
        %v955 = vunpack.c.h.b16 %v715
        %v956 = vunpack.c.l.b16 %v716
        %v957 = vunpack.c.h.b16 %v716
        %v958 = vunpack.c.l.b16 %v717
        %v959 = vunpack.c.h.b16 %v717
        %v960 = vunpack.c.l.b16 %v718
        %v961 = vunpack.c.h.b16 %v718
        %v962 = vunpack.c.l.b16 %v719
        %v963 = vunpack.c.h.b16 %v719
        %v964 = vunpack.c.l.b16 %v720
        %v965 = vunpack.c.h.b16 %v720
        %v966 = vunpack.c.l.b16 %v721
        %v967 = vunpack.c.h.b16 %v721
        %v968 = vunpack.c.l.b16 %v722
        %v969 = vunpack.c.h.b16 %v722
        %v970 = vunpack.c.l.b16 %v723
        %v971 = vunpack.c.h.b16 %v723
        %v972 = vunpack.c.l.b16 %v724
        %v973 = vunpack.c.h.b16 %v724
        %v974 = vunpack.c.l.b16 %v725
        %v975 = vunpack.c.h.b16 %v725
        %v976 = vunpack.c.l.b16 %v726
        %v977 = vunpack.c.h.b16 %v726
        %v978 = vunpack.c.l.b16 %v727
        %v979 = vunpack.c.h.b16 %v727
        %v980 = vunpack.c.l.b16 %v728
        %v981 = vunpack.c.h.b16 %v728
        %v982 = vunpack.c.l.b16 %v729
        %v983 = vunpack.c.h.b16 %v729
        %v984 = vunpack.c.l.b16 %v730
        %v985 = vunpack.c.h.b16 %v730
        %v986 = vunpack.c.l.b16 %v731
        %v987 = vunpack.c.h.b16 %v731
        %v988 = vunpack.c.l.b16 %v732
        %v989 = vunpack.c.h.b16 %v732
        %v990 = vunpack.c.l.b16 %v733
        %v991 = vunpack.c.h.b16 %v733
        %v992 = vunpack.c.l.b16 %v734
        %v993 = vunpack.c.h.b16 %v734
        %v994 = vunpack.c.l.b16 %v735
        %v995 = vunpack.c.h.b16 %v735
        %v996 = vunpack.c.l.b16 %v736
        %v997 = vunpack.c.h.b16 %v736
        %v998 = vunpack.c.l.b16 %v737
        %v999 = vunpack.c.h.b16 %v737
        %v1000 = vunpack.c.l.b16 %v738
        %v1001 = vunpack.c.h.b16 %v738
        %v1002 = vunpack.c.l.b16 %v739
        %v1003 = vunpack.c.h.b16 %v739
        %v1004 = vunpack.c.l.b16 %v740
        %v1005 = vunpack.c.h.b16 %v740
        %v1006 = vunpack.c.l.b16 %v741
        %v1007 = vunpack.c.h.b16 %v741
        %v1008 = vunpack.c.l.b16 %v742
        %v1009 = vunpack.c.h.b16 %v742
        %v1010 = vunpack.c.l.b16 %v743
        %v1011 = vunpack.c.h.b16 %v743
        %v1012 = vunpack.c.l.b16 %v744
        %v1013 = vunpack.c.h.b16 %v744
        %v1014 = vunpack.c.l.b16 %v745
        %v1015 = vunpack.c.h.b16 %v745
        %v1016 = vunpack.c.l.b16 %v746
        %v1017 = vunpack.c.h.b16 %v746
        %v1018 = vunpack.c.l.b16 %v747
        %v1019 = vunpack.c.h.b16 %v747
        %v1020 = vunpack.c.l.b16 %v748
        %v1021 = vunpack.c.h.b16 %v748
        %v1022 = vunpack.c.l.b16 %v749
        %v1023 = vunpack.c.h.b16 %v749
        %v1024 = vunpack.c.l.b16 %v750
        %v1025 = vunpack.c.h.b16 %v750
        %v1026 = vunpack.c.l.b16 %v751
        %v1027 = vunpack.c.h.b16 %v751
        %v1028 = vunpack.c.l.b16 %v752
        %v1029 = vunpack.c.h.b16 %v752
        %v1030 = vunpack.c.l.b16 %v753
        %v1031 = vunpack.c.h.b16 %v753
        %v1032 = vunpack.c.l.b16 %v754
        %v1033 = vunpack.c.h.b16 %v754
        %v1034 = vunpack.c.l.b16 %v755
        %v1035 = vunpack.c.h.b16 %v755
        %v1036 = vunpack.c.l.b16 %v756
        %v1037 = vunpack.c.h.b16 %v756
        %v1038 = vunpack.c.l.b16 %v757
        %v1039 = vunpack.c.h.b16 %v757
        %v1040 = vunpack.c.l.b16 %v758
        %v1041 = vunpack.c.h.b16 %v758
        %v1042 = vunpack.c.l.b16 %v759
        %v1043 = vunpack.c.h.b16 %v759
        %v1044 = vunpack.c.l.b16 %v760
        %v1045 = vunpack.c.h.b16 %v760
        %v1046 = vunpack.c.l.b16 %v761
        %v1047 = vunpack.c.h.b16 %v761
        %v1048 = vunpack.c.l.b16 %v762
        %v1049 = vunpack.c.h.b16 %v762
        %v1050 = vunpack.c.l.b16 %v763
        %v1051 = vunpack.c.h.b16 %v763
        %v1052 = vpack.c.b16 %v862, %v860
        %v1053 = vpack.c.b16 %v863, %v861
        %v1054 = vpack.c.b16 %v866, %v864
        %v1055 = vpack.c.b16 %v867, %v865
        %v1056 = vpack.c.b16 %v870, %v868
        %v1057 = vpack.c.b16 %v871, %v869
        %v1058 = vpack.c.b16 %v874, %v872
        %v1059 = vpack.c.b16 %v875, %v873
        %v1060 = vpack.c.b16 %v878, %v876
        %v1061 = vpack.c.b16 %v879, %v877
        %v1062 = vpack.c.b16 %v882, %v880
        %v1063 = vpack.c.b16 %v883, %v881
        %v1064 = vpack.c.b16 %v886, %v884
        %v1065 = vpack.c.b16 %v887, %v885
        %v1066 = vpack.c.b16 %v890, %v888
        %v1067 = vpack.c.b16 %v891, %v889
        %v1068 = vpack.c.b16 %v894, %v892
        %v1069 = vpack.c.b16 %v895, %v893
        %v1070 = vpack.c.b16 %v898, %v896
        %v1071 = vpack.c.b16 %v899, %v897
        %v1072 = vpack.c.b16 %v902, %v900
        %v1073 = vpack.c.b16 %v903, %v901
        %v1074 = vpack.c.b16 %v906, %v904
        %v1075 = vpack.c.b16 %v907, %v905
        %v1076 = vpack.c.b16 %v910, %v908
        %v1077 = vpack.c.b16 %v911, %v909
        %v1078 = vpack.c.b16 %v914, %v912
        %v1079 = vpack.c.b16 %v915, %v913
        %v1080 = vpack.c.b16 %v918, %v916
        %v1081 = vpack.c.b16 %v919, %v917
        %v1082 = vpack.c.b16 %v922, %v920
        %v1083 = vpack.c.b16 %v923, %v921
        %v1084 = vpack.c.b16 %v926, %v924
        %v1085 = vpack.c.b16 %v927, %v925
        %v1086 = vpack.c.b16 %v930, %v928
        %v1087 = vpack.c.b16 %v931, %v929
        %v1088 = vpack.c.b16 %v934, %v932
        %v1089 = vpack.c.b16 %v935, %v933
        %v1090 = vpack.c.b16 %v938, %v936
        %v1091 = vpack.c.b16 %v939, %v937
        %v1092 = vpack.c.b16 %v942, %v940
        %v1093 = vpack.c.b16 %v943, %v941
        %v1094 = vpack.c.b16 %v946, %v944
        %v1095 = vpack.c.b16 %v947, %v945
        %v1096 = vpack.c.b16 %v950, %v948
        %v1097 = vpack.c.b16 %v951, %v949
        %v1098 = vpack.c.b16 %v954, %v952
        %v1099 = vpack.c.b16 %v955, %v953
        %v1100 = vpack.c.b16 %v958, %v956
        %v1101 = vpack.c.b16 %v959, %v957
        %v1102 = vpack.c.b16 %v962, %v960
        %v1103 = vpack.c.b16 %v963, %v961
        %v1104 = vpack.c.b16 %v966, %v964
        %v1105 = vpack.c.b16 %v967, %v965
        %v1106 = vpack.c.b16 %v970, %v968
        %v1107 = vpack.c.b16 %v971, %v969
        %v1108 = vpack.c.b16 %v974, %v972
        %v1109 = vpack.c.b16 %v975, %v973
        %v1110 = vpack.c.b16 %v978, %v976
        %v1111 = vpack.c.b16 %v979, %v977
        %v1112 = vpack.c.b16 %v982, %v980
        %v1113 = vpack.c.b16 %v983, %v981
        %v1114 = vpack.c.b16 %v986, %v984
        %v1115 = vpack.c.b16 %v987, %v985
        %v1116 = vpack.c.b16 %v990, %v988
        %v1117 = vpack.c.b16 %v991, %v989
        %v1118 = vpack.c.b16 %v994, %v992
        %v1119 = vpack.c.b16 %v995, %v993
        %v1120 = vpack.c.b16 %v998, %v996
        %v1121 = vpack.c.b16 %v999, %v997
        %v1122 = vpack.c.b16 %v1002, %v1000
        %v1123 = vpack.c.b16 %v1003, %v1001
        %v1124 = vpack.c.b16 %v1006, %v1004
        %v1125 = vpack.c.b16 %v1007, %v1005
        %v1126 = vpack.c.b16 %v1010, %v1008
        %v1127 = vpack.c.b16 %v1011, %v1009
        %v1128 = vpack.c.b16 %v1014, %v1012
        %v1129 = vpack.c.b16 %v1015, %v1013
        %v1130 = vpack.c.b16 %v1018, %v1016
        %v1131 = vpack.c.b16 %v1019, %v1017
        %v1132 = vpack.c.b16 %v1022, %v1020
        %v1133 = vpack.c.b16 %v1023, %v1021
        %v1134 = vpack.c.b16 %v1026, %v1024
        %v1135 = vpack.c.b16 %v1027, %v1025
        %v1136 = vpack.c.b16 %v1030, %v1028
        %v1137 = vpack.c.b16 %v1031, %v1029
        %v1138 = vpack.c.b16 %v1034, %v1032
        %v1139 = vpack.c.b16 %v1035, %v1033
        %v1140 = vpack.c.b16 %v1038, %v1036
        %v1141 = vpack.c.b16 %v1039, %v1037
        %v1142 = vpack.c.b16 %v1042, %v1040
        %v1143 = vpack.c.b16 %v1043, %v1041
        %v1144 = vpack.c.b16 %v1046, %v1044
        %v1145 = vpack.c.b16 %v1047, %v1045
        %v1146 = vpack.c.b16 %v1050, %v1048
        %v1147 = vpack.c.b16 %v1051, %v1049
        %1244 = vmatpush.bf16.msra.mxu0 %v1066
        %1245 = vmatpush.bf16.msra.mxu0 %v1064
        %1246 = vmatpush.bf16.msra.mxu0 %v1062
        %1247 = vmatpush.bf16.msra.mxu0 %v1060
        %1248 = vmatpush.bf16.msra.mxu0 %v1058
        %1249 = vmatpush.bf16.msra.mxu0 %v1056
        %1250 = vmatpush.bf16.msra.mxu0 %v1054
        %1251 = vmatpush.bf16.msra.mxu0 %v1052
        %1252 = vmatmul.bf16.gmra.mxu0 %v662
        %v1253 = vpop.f32.mrf.mxu0
        %v1254 = vadd.f32 0.0, %v1253
        %v1255 = vpop.f32.mrf.mxu0
        %v1256 = vadd.f32 0.0, %v1255
        %1257 = vdwg.mxu0
        %1258 = vmatpush.bf16.msra.mxu0 %v1082
        %1259 = vmatpush.bf16.msra.mxu0 %v1080
        %1260 = vmatpush.bf16.msra.mxu0 %v1078
        %1261 = vmatpush.bf16.msra.mxu0 %v1076
        %1262 = vmatpush.bf16.msra.mxu0 %v1074
        %1263 = vmatpush.bf16.msra.mxu0 %v1072
        %1264 = vmatpush.bf16.msra.mxu0 %v1070
        %1265 = vmatpush.bf16.msra.mxu0 %v1068
        %1266 = vmatmul.bf16.gmra.mxu0 %v663
        %v1267 = vpop.f32.mrf.mxu0
        %v1268 = vadd.f32 %v1254, %v1267
        %v1269 = vpop.f32.mrf.mxu0
        %v1270 = vadd.f32 %v1256, %v1269
        %1271 = vdwg.mxu0
        %1272 = vmatpush.bf16.msra.mxu0 %v1098
        %1273 = vmatpush.bf16.msra.mxu0 %v1096
        %1274 = vmatpush.bf16.msra.mxu0 %v1094
        %1275 = vmatpush.bf16.msra.mxu0 %v1092
        %1276 = vmatpush.bf16.msra.mxu0 %v1090
        %1277 = vmatpush.bf16.msra.mxu0 %v1088
        %1278 = vmatpush.bf16.msra.mxu0 %v1086
        %1279 = vmatpush.bf16.msra.mxu0 %v1084
        %1280 = vmatmul.bf16.gmra.mxu0 %v664
        %v1281 = vpop.f32.mrf.mxu0
        %v1282 = vadd.f32 %v1268, %v1281
        %v1283 = vpop.f32.mrf.mxu0
        %v1284 = vadd.f32 %v1270, %v1283
        %1285 = vdwg.mxu0
        %1286 = vmatpush.bf16.msra.mxu0 %v1114
        %1287 = vmatpush.bf16.msra.mxu0 %v1112
        %1288 = vmatpush.bf16.msra.mxu0 %v1110
        %1289 = vmatpush.bf16.msra.mxu0 %v1108
        %1290 = vmatpush.bf16.msra.mxu0 %v1106
        %1291 = vmatpush.bf16.msra.mxu0 %v1104
        %1292 = vmatpush.bf16.msra.mxu0 %v1102
        %1293 = vmatpush.bf16.msra.mxu0 %v1100
        %1294 = vmatmul.bf16.gmra.mxu0 %v665
        %v1295 = vpop.f32.mrf.mxu0
        %v1296 = vadd.f32 %v1282, %v1295
        %v1297 = vpop.f32.mrf.mxu0
        %v1298 = vadd.f32 %v1284, %v1297
        %1299 = vdwg.mxu0
        %1300 = vmatpush.bf16.msra.mxu0 %v1130
        %1301 = vmatpush.bf16.msra.mxu0 %v1128
        %1302 = vmatpush.bf16.msra.mxu0 %v1126
        %1303 = vmatpush.bf16.msra.mxu0 %v1124
        %1304 = vmatpush.bf16.msra.mxu0 %v1122
        %1305 = vmatpush.bf16.msra.mxu0 %v1120
        %1306 = vmatpush.bf16.msra.mxu0 %v1118
        %1307 = vmatpush.bf16.msra.mxu0 %v1116
        %1308 = vmatmul.bf16.gmra.mxu0 %v666
        %v1309 = vpop.f32.mrf.mxu0
        %v1310 = vadd.f32 %v1296, %v1309
        %v1311 = vpop.f32.mrf.mxu0
        %v1312 = vadd.f32 %v1298, %v1311
        %1313 = vdwg.mxu0
        %1314 = vmatpush.bf16.msra.mxu0 %v1146
        %1315 = vmatpush.bf16.msra.mxu0 %v1144
        %1316 = vmatpush.bf16.msra.mxu0 %v1142
        %1317 = vmatpush.bf16.msra.mxu0 %v1140
        %1318 = vmatpush.bf16.msra.mxu0 %v1138
        %1319 = vmatpush.bf16.msra.mxu0 %v1136
        %1320 = vmatpush.bf16.msra.mxu0 %v1134
        %1321 = vmatpush.bf16.msra.mxu0 %v1132
        %1322 = vmatmul.bf16.gmra.mxu0 %v667
        %v1323 = vpop.f32.mrf.mxu0
        %v1324 = vadd.f32 %v1310, %v1323
        %v1325 = vpop.f32.mrf.mxu0
        %v1326 = vadd.f32 %v1312, %v1325
        %1327 = vdwg.mxu0
        %1328 = vmatpush.bf16.msra.mxu0 %v1067
        %1329 = vmatpush.bf16.msra.mxu0 %v1065
        %1330 = vmatpush.bf16.msra.mxu0 %v1063
        %1331 = vmatpush.bf16.msra.mxu0 %v1061
        %1332 = vmatpush.bf16.msra.mxu0 %v1059
        %1333 = vmatpush.bf16.msra.mxu0 %v1057
        %1334 = vmatpush.bf16.msra.mxu0 %v1055
        %1335 = vmatpush.bf16.msra.mxu0 %v1053
        %1336 = vmatmul.bf16.gmra.mxu0 %v662
        %v1337 = vpop.f32.mrf.mxu0
        %v1338 = vadd.f32 0.0, %v1337
        %v1339 = vpop.f32.mrf.mxu0
        %v1340 = vadd.f32 0.0, %v1339
        %1341 = vdwg.mxu0
        %1342 = vmatpush.bf16.msra.mxu0 %v1083
        %1343 = vmatpush.bf16.msra.mxu0 %v1081
        %1344 = vmatpush.bf16.msra.mxu0 %v1079
        %1345 = vmatpush.bf16.msra.mxu0 %v1077
        %1346 = vmatpush.bf16.msra.mxu0 %v1075
        %1347 = vmatpush.bf16.msra.mxu0 %v1073
        %1348 = vmatpush.bf16.msra.mxu0 %v1071
        %1349 = vmatpush.bf16.msra.mxu0 %v1069
        %1350 = vmatmul.bf16.gmra.mxu0 %v663
        %v1351 = vpop.f32.mrf.mxu0
        %v1352 = vadd.f32 %v1338, %v1351
        %v1353 = vpop.f32.mrf.mxu0
        %v1354 = vadd.f32 %v1340, %v1353
        %1355 = vdwg.mxu0
        %1356 = vmatpush.bf16.msra.mxu0 %v1099
        %1357 = vmatpush.bf16.msra.mxu0 %v1097
        %1358 = vmatpush.bf16.msra.mxu0 %v1095
        %1359 = vmatpush.bf16.msra.mxu0 %v1093
        %1360 = vmatpush.bf16.msra.mxu0 %v1091
        %1361 = vmatpush.bf16.msra.mxu0 %v1089
        %1362 = vmatpush.bf16.msra.mxu0 %v1087
        %1363 = vmatpush.bf16.msra.mxu0 %v1085
        %1364 = vmatmul.bf16.gmra.mxu0 %v664
        %v1365 = vpop.f32.mrf.mxu0
        %v1366 = vadd.f32 %v1352, %v1365
        %v1367 = vpop.f32.mrf.mxu0
        %v1368 = vadd.f32 %v1354, %v1367
        %1369 = vdwg.mxu0
        %1370 = vmatpush.bf16.msra.mxu0 %v1115
        %1371 = vmatpush.bf16.msra.mxu0 %v1113
        %1372 = vmatpush.bf16.msra.mxu0 %v1111
        %1373 = vmatpush.bf16.msra.mxu0 %v1109
        %1374 = vmatpush.bf16.msra.mxu0 %v1107
        %1375 = vmatpush.bf16.msra.mxu0 %v1105
        %1376 = vmatpush.bf16.msra.mxu0 %v1103
        %1377 = vmatpush.bf16.msra.mxu0 %v1101
        %1378 = vmatmul.bf16.gmra.mxu0 %v665
        %v1379 = vpop.f32.mrf.mxu0
        %v1380 = vadd.f32 %v1366, %v1379
        %v1381 = vpop.f32.mrf.mxu0
        %v1382 = vadd.f32 %v1368, %v1381
        %1383 = vdwg.mxu0
        %1384 = vmatpush.bf16.msra.mxu0 %v1131
        %1385 = vmatpush.bf16.msra.mxu0 %v1129
        %1386 = vmatpush.bf16.msra.mxu0 %v1127
        %1387 = vmatpush.bf16.msra.mxu0 %v1125
        %1388 = vmatpush.bf16.msra.mxu0 %v1123
        %1389 = vmatpush.bf16.msra.mxu0 %v1121
        %1390 = vmatpush.bf16.msra.mxu0 %v1119
        %1391 = vmatpush.bf16.msra.mxu0 %v1117
        %1392 = vmatmul.bf16.gmra.mxu0 %v666
        %v1393 = vpop.f32.mrf.mxu0
        %v1394 = vadd.f32 %v1380, %v1393
        %v1395 = vpop.f32.mrf.mxu0
        %v1396 = vadd.f32 %v1382, %v1395
        %1397 = vdwg.mxu0
        %1398 = vmatpush.bf16.msra.mxu0 %v1147
        %1399 = vmatpush.bf16.msra.mxu0 %v1145
        %1400 = vmatpush.bf16.msra.mxu0 %v1143
        %1401 = vmatpush.bf16.msra.mxu0 %v1141
        %1402 = vmatpush.bf16.msra.mxu0 %v1139
        %1403 = vmatpush.bf16.msra.mxu0 %v1137
        %1404 = vmatpush.bf16.msra.mxu0 %v1135
        %1405 = vmatpush.bf16.msra.mxu0 %v1133
        %1406 = vmatmul.bf16.gmra.mxu0 %v667
        %v1407 = vpop.f32.mrf.mxu0
        %v1408 = vadd.f32 %v1394, %v1407
        %v1409 = vpop.f32.mrf.mxu0
        %v1410 = vadd.f32 %v1396, %v1409
        %1411 = vdwg.mxu0
        %v1413 = vperm.slane %v567, 0
        %v1414 = vperm.slane %v567, 1
        %v1417 = vmul.f32 %v1324, %v1413
        %v1418 = vmul.f32 %v1408, %v1414
        %v1419 = vmul.f32 %v1326, %v1413
        %v1420 = vmul.f32 %v1410, %v1414
        %v1422 = vperm.slane %v569, 0
        %v1423 = vperm.slane %v569, 1
        %v1426 = vadd.f32 %v1417, %v1422
        %v1427 = vadd.f32 %v1418, %v1423
        %v1428 = vadd.f32 %v1419, %v1422
        %v1429 = vadd.f32 %v1420, %v1423
        %v1430 = vmul.f32 %v1426, 0.01
        %v1431 = vmul.f32 %v1427, 0.01
        %v1432 = vmul.f32 %v1428, 0.01
        %v1433 = vmul.f32 %v1429, 0.01
        %v1434 = vmax.f32 %v1426, %v1430
        %v1435 = vmax.f32 %v1427, %v1431
        %v1436 = vmax.f32 %v1428, %v1432
        %v1437 = vmax.f32 %v1429, %v1433
        %1438 = vst [vmem:[%s245] sm:$0xff] %v1434
        %1439 = vst [vmem:[%s245 + $0x8] sm:$0xff] %v1435
        %1440 = vst [vmem:[%s245 + $0x10] sm:$0xff] %v1436
        %1441 = vst [vmem:[%s245 + $0x18] sm:$0xff] %v1437
        %s1442 = smul.u32 2, %s17
        %p1443 = scmp.lt.s32.totalorder %s1442, 3
        %s1444 = scalar_select %p1443, %s1442, 3
        %s1445 = smul.addr %s1444, 2
        %s1446 = smul.addr %s1445, 8
        %s1447 = scalar_lea.vmem %s5, %s1446
        // Predicated region
        $region45: #{inconv_forward.1} parent=39 // pred_check
          %p1448 = pneg %p145
        $region46: #{inconv_forward.1} parent=39 // pred_check_branch
          %1450 = sbr.rel (%p1448) target = $region48
        $region47: #{inconv_forward.1} parent=39 // pred_region
          %s1451 = smul.u32 2, %s17
        $region48: #{inconv_forward.1} parent=39 // pred_fallthru
          _
      $region40: #{inconv_forward.1} parent=5 // pred_fallthru
        _
      %p1452 = scmp.le.s32.totalorder 2, %s12
      // Predicated region
      $region49: #{inconv_forward.1} parent=5 // pred_check
        %p1453 = pneg %p1452
      $region50: #{inconv_forward.1} parent=5 // pred_check_branch
        %1455 = sbr.rel (%p1453) target = $region52
      $region51: #{inconv_forward.1} parent=5 // pred_region
        %s1456 = ssub.s32 %s12, 2
        // Predicated region
        $region53: #{inconv_forward.1} parent=51 // pred_check
          %p1457 = pneg %p151
        $region54: #{inconv_forward.1} parent=51 // pred_check_branch
          %1459 = sbr.rel (%p1457) target = $region56
        $region55: #{inconv_forward.1} parent=51 // pred_region
          %s1460 = smul.u32 2, %s18
          %p1461 = scmp.lt.s32.totalorder %s1460, 3
          %s1462 = scalar_select %p1461, %s1460, 3
          %s1463 = smul.addr %s1462, 2
          %s1464 = smul.addr %s1463, 8
          %s1465 = scalar_lea.vmem %s5, %s1464
        $region56: #{inconv_forward.1} parent=51 // pred_fallthru
          _
      $region52: #{inconv_forward.1} parent=5 // pred_fallthru
        _
    $region6: #{inconv_forward.1} parent=1 // loop_footer
      %s16 = sadd.s32 1, %s12
    $region7: #{inconv_forward.1} parent=1 // loop_footer_branch
      %11 = sbr.rel target = $region3
    $region8: #{inconv_forward.1} parent=1 // loop_exit
      _
    %1466 = vsyncpa [#allocation3], 1
    %s1467 = scalar_lea.sflag [#allocation3], 1
    %1468 = vsyncpa %s1467, 1

</llo_original>
